<compile_context>
chip_gen: v7x
topology: tpu7x:2x2x1
jax: 0.10.0
libtpu: 0.0.40
codegen_flags: <defaults>
</compile_context>

<pallas_src>
import functools

import jax
import jax.numpy as jnp
from jax import lax
from jax.experimental import pallas as pl
from jax.experimental.pallas import tpu as pltpu


def _conv1d_single_window_kernel(inp_ref, x_ref, w_ref, o_ref):
    # inp_ref: (1, 1)   f32 SMEM  -- runtime scalar bias
    # x_ref:   (N, C, L) f32 VMEM -- whole input; only taps [0, K) are used
    # w_ref:   (O, C, K) f32 VMEM
    # o_ref:   (N, O)    f32 VMEM
    O, C, K = w_ref.shape
    N = x_ref.shape[0]
    bias = inp_ref[0, 0]

    acc = jnp.zeros((N, O), dtype=jnp.float32)
    # Statically unrolled loop over the small channel count.  Each step is a
    # strictly 2-D (N,K)x(O,K) contraction with a single contracting dim, so
    # Mosaic lowers it straight to the MXU with no in-kernel reshape/relayout.
    # Operands are cast to bf16 (native MXU path) with f32 accumulation.
    for c in range(C):
        x_c = x_ref[:, c, :K].astype(jnp.bfloat16)   # (N, K) single window @ offset 0
        w_c = w_ref[:, c, :].astype(jnp.bfloat16)    # (O, K)
        acc = acc + lax.dot_general(
            x_c, w_c,
            dimension_numbers=(((1,), (1,)), ((), ())),
            preferred_element_type=jnp.float32,
        )
    o_ref[...] = acc + bias


@functools.partial(jax.jit, static_argnames=("stride",))
def conv1d_big_stride_add(x, w, inp, *, stride=757):
    """Equivalent to F.conv1d(x, w, stride=stride) + inp for the case where
    the stride is large enough that only a single output position exists."""
    N, C, L = x.shape
    O, Cw, K = w.shape
    assert C == Cw, "in_channels of x must match weight"
    L_out = (L - K) // stride + 1
    assert L_out == 1, "kernel assumes a single conv output position"

    # Runtime scalar bias -> (1,1) f32 SMEM operand (no recompile per value).
    inp_arr = jnp.asarray(inp, dtype=jnp.float32).reshape(1, 1)

    cost = pl.CostEstimate(
        flops=2 * N * O * C * K,
        bytes_accessed=4 * (N * C * L + O * C * K + N * O) + 4,
        transcendentals=0,
    )

    out = pl.pallas_call(
        _conv1d_single_window_kernel,
        out_shape=jax.ShapeDtypeStruct((N, O), jnp.float32),
        in_specs=[
            pl.BlockSpec(memory_space=pltpu.MemorySpace.SMEM),  # inp scalar
            pl.BlockSpec(memory_space=pltpu.MemorySpace.VMEM),  # x (N,C,L)
            pl.BlockSpec(memory_space=pltpu.MemorySpace.VMEM),  # w (O,C,K)
        ],
        out_specs=pl.BlockSpec(memory_space=pltpu.MemorySpace.VMEM),
        cost_estimate=cost,
    )(inp_arr, x, w)

    # conv1d output shape is (N, O, L_out) with L_out == 1.
    return out.reshape(N, O, 1)


if __name__ == "__main__":
    key = jax.random.PRNGKey(0)
    k1, k2 = jax.random.split(key)

    # Small shapes consistent with the module's forward:
    # x1: (batch=2, in_channels=4, length=39), x2 (weight): (out=3, in=4, k=5)
    x1 = jax.random.normal(k1, (2, 4, 39), dtype=jnp.float32)
    x2 = jax.random.normal(k2, (3, 4, 5), dtype=jnp.float32)
    inp = 1

    out = conv1d_big_stride_add(x1, x2, inp, stride=757)
    out = jax.block_until_ready(out)

    # Reference in plain JAX (conv_general_dilated == F.conv1d semantics).
    ref = lax.conv_general_dilated(
        x1, x2, window_strides=(757,), padding="VALID",
        dimension_numbers=("NCH", "OIH", "NCH")) + inp
    assert out.shape == ref.shape == (2, 3, 1)
    # bf16 MXU operands vs f32 reference -> loosened tolerance.
    assert jnp.allclose(out, ref, atol=1e-1, rtol=5e-2), (out, ref)

    print("KERNEL_OK")
</pallas_src>

<mosaic_0001>
module attributes {stable_mosaic.version = 11 : i64} {
  func.func @_conv1d_single_window_kernel(%arg0: memref<1x1xf32, #tpu.memory_space<smem>>, %arg1: memref<2x4x39xf32, #tpu.memory_space<vmem>>, %arg2: memref<3x4x5xf32, #tpu.memory_space<vmem>>, %arg3: memref<2x3xf32, #tpu.memory_space<vmem>>) attributes {dimension_semantics = [], scalar_prefetch = 0 : i64, scratch_operands = 0 : i64, tpu.core_type = #tpu.core_type<tc>} {
    %c0 = arith.constant 0 : index
    %c0_0 = arith.constant 0 : index
    %0 = memref.load %arg0[%c0, %c0_0] : memref<1x1xf32, #tpu.memory_space<smem>>
    %cst = arith.constant 0.000000e+00 : f32
    %1 = vector.broadcast %cst : f32 to vector<2x3xf32>
    %c0_1 = arith.constant 0 : index
    %c0_2 = arith.constant 0 : index
    %c0_3 = arith.constant 0 : index
    %2 = vector.load %arg1[%c0_1, %c0_2, %c0_3] : memref<2x4x39xf32, #tpu.memory_space<vmem>>, vector<2x1x5xf32>
    %3 = vector.shape_cast %2 : vector<2x1x5xf32> to vector<2x5xf32>
    %4 = arith.truncf %3 : vector<2x5xf32> to vector<2x5xbf16>
    %c0_4 = arith.constant 0 : index
    %c0_5 = arith.constant 0 : index
    %c0_6 = arith.constant 0 : index
    %5 = vector.load %arg2[%c0_4, %c0_5, %c0_6] : memref<3x4x5xf32, #tpu.memory_space<vmem>>, vector<3x1x5xf32>
    %6 = vector.shape_cast %5 : vector<3x1x5xf32> to vector<3x5xf32>
    %7 = arith.truncf %6 : vector<3x5xf32> to vector<3x5xbf16>
    %cst_7 = arith.constant dense<0.000000e+00> : vector<2x3xf32>
    %8 = tpu.matmul %4, %7, %cst_7 {dimension_numbers = #tpu.dot_dimension_numbers<[1], [1], [0], [0], [0, 0, 1, 0], [], []>} : vector<2x5xbf16>, vector<3x5xbf16>, vector<2x3xf32> -> vector<2x3xf32>
    %9 = arith.addf %1, %8 : vector<2x3xf32>
    %c0_8 = arith.constant 0 : index
    %c1 = arith.constant 1 : index
    %c0_9 = arith.constant 0 : index
    %10 = vector.load %arg1[%c0_8, %c1, %c0_9] : memref<2x4x39xf32, #tpu.memory_space<vmem>>, vector<2x1x5xf32>
    %11 = vector.shape_cast %10 : vector<2x1x5xf32> to vector<2x5xf32>
    %12 = arith.truncf %11 : vector<2x5xf32> to vector<2x5xbf16>
    %c0_10 = arith.constant 0 : index
    %c1_11 = arith.constant 1 : index
    %c0_12 = arith.constant 0 : index
    %13 = vector.load %arg2[%c0_10, %c1_11, %c0_12] : memref<3x4x5xf32, #tpu.memory_space<vmem>>, vector<3x1x5xf32>
    %14 = vector.shape_cast %13 : vector<3x1x5xf32> to vector<3x5xf32>
    %15 = arith.truncf %14 : vector<3x5xf32> to vector<3x5xbf16>
    %cst_13 = arith.constant dense<0.000000e+00> : vector<2x3xf32>
    %16 = tpu.matmul %12, %15, %cst_13 {dimension_numbers = #tpu.dot_dimension_numbers<[1], [1], [0], [0], [0, 0, 1, 0], [], []>} : vector<2x5xbf16>, vector<3x5xbf16>, vector<2x3xf32> -> vector<2x3xf32>
    %17 = arith.addf %9, %16 : vector<2x3xf32>
    %c0_14 = arith.constant 0 : index
    %c2 = arith.constant 2 : index
    %c0_15 = arith.constant 0 : index
    %18 = vector.load %arg1[%c0_14, %c2, %c0_15] : memref<2x4x39xf32, #tpu.memory_space<vmem>>, vector<2x1x5xf32>
    %19 = vector.shape_cast %18 : vector<2x1x5xf32> to vector<2x5xf32>
    %20 = arith.truncf %19 : vector<2x5xf32> to vector<2x5xbf16>
    %c0_16 = arith.constant 0 : index
    %c2_17 = arith.constant 2 : index
    %c0_18 = arith.constant 0 : index
    %21 = vector.load %arg2[%c0_16, %c2_17, %c0_18] : memref<3x4x5xf32, #tpu.memory_space<vmem>>, vector<3x1x5xf32>
    %22 = vector.shape_cast %21 : vector<3x1x5xf32> to vector<3x5xf32>
    %23 = arith.truncf %22 : vector<3x5xf32> to vector<3x5xbf16>
    %cst_19 = arith.constant dense<0.000000e+00> : vector<2x3xf32>
    %24 = tpu.matmul %20, %23, %cst_19 {dimension_numbers = #tpu.dot_dimension_numbers<[1], [1], [0], [0], [0, 0, 1, 0], [], []>} : vector<2x5xbf16>, vector<3x5xbf16>, vector<2x3xf32> -> vector<2x3xf32>
    %25 = arith.addf %17, %24 : vector<2x3xf32>
    %c0_20 = arith.constant 0 : index
    %c3 = arith.constant 3 : index
    %c0_21 = arith.constant 0 : index
    %26 = vector.load %arg1[%c0_20, %c3, %c0_21] : memref<2x4x39xf32, #tpu.memory_space<vmem>>, vector<2x1x5xf32>
    %27 = vector.shape_cast %26 : vector<2x1x5xf32> to vector<2x5xf32>
    %28 = arith.truncf %27 : vector<2x5xf32> to vector<2x5xbf16>
    %c0_22 = arith.constant 0 : index
    %c3_23 = arith.constant 3 : index
    %c0_24 = arith.constant 0 : index
    %29 = vector.load %arg2[%c0_22, %c3_23, %c0_24] : memref<3x4x5xf32, #tpu.memory_space<vmem>>, vector<3x1x5xf32>
    %30 = vector.shape_cast %29 : vector<3x1x5xf32> to vector<3x5xf32>
    %31 = arith.truncf %30 : vector<3x5xf32> to vector<3x5xbf16>
    %cst_25 = arith.constant dense<0.000000e+00> : vector<2x3xf32>
    %32 = tpu.matmul %28, %31, %cst_25 {dimension_numbers = #tpu.dot_dimension_numbers<[1], [1], [0], [0], [0, 0, 1, 0], [], []>} : vector<2x5xbf16>, vector<3x5xbf16>, vector<2x3xf32> -> vector<2x3xf32>
    %33 = arith.addf %25, %32 : vector<2x3xf32>
    %34 = vector.broadcast %0 : f32 to vector<2x3xf32>
    %35 = arith.addf %33, %34 : vector<2x3xf32>
    %c0_26 = arith.constant 0 : index
    %c0_27 = arith.constant 0 : index
    %36 = vector.load %arg3[%c0_26, %c0_27] : memref<2x3xf32, #tpu.memory_space<vmem>>, vector<2x3xf32>
    tpu.vector_store %arg3[%c0_26, %c0_27], %35 {strides = array<i32>} : memref<2x3xf32, #tpu.memory_space<vmem>>, vector<2x3xf32>,
    return
  }
}

</mosaic_0001>

<llo_original>
// kernel: conv1d_big_stride_add.1
$region0: #{conv1d_big_stride_add.1}
  #allocation0 [shape = 'u32[]', space=smem, size = 0x4, offset = 0x4, fixed_abs, tag = 'smem constant byte address 0x4 - core index']
  #allocation1 [shape = 'u32[144,128]{1,0:T(1,128)}', space=vmem, size = 0x12000, scoped, tag = 'internal scratch']
  #allocation2 [shape = 'f32[1,1]{1,0:T(1,128)S(6)}', space=smem, size = 0x200, scoped, tag = 'scoped memory for conv1d_big_stride_add.1']
  %s0 = inlined_call_operand.<no memory space> [shape: f32[1,1], index: 0, kind: input, shape index: {}]
  %s1 = inlined_call_operand.hbm [shape: f32[2,4,39], index: 1, kind: input, shape index: {}]
  %s2 = inlined_call_operand.vmem [shape: f32[3,4,5], index: 2, kind: input, shape index: {}]
  %s3 = inlined_call_operand.hbm [shape: f32[2,3], index: 3, kind: output, shape index: {}]
  %s4 = sld [smem:[#allocation0]]
  $region26: #{conv1d_big_stride_add.1} parent=0
    _
  %s6 = ssub.s32 1, %s4
  %s7 = scalar_select 0, %s6, %s4
  %8 = sst [smem:[#allocation2]] %s0
  $region1: #{conv1d_big_stride_add.1} parent=0
    #allocation3 [shape = 'u8[4096]{0}', space=vmem, size = 0x1000, scoped, tag = 'input window, operand 1, single buffered']
    #allocation4 [shape = 's32[1]{0}', space=sflag, size = 0x4, scoped, tag = 'scoped memory for conv1d_big_stride_add.1']
    #allocation5 [shape = 's32[1]{0}', space=sflag, size = 0x4, scoped, tag = 'scoped memory for conv1d_big_stride_add.1']
    #allocation6 [shape = 'u8[1024]{0}', space=vmem, size = 0x400, scoped, tag = 'output window, operand 0, single buffered']
    %9 = vsyncpa [#allocation4], 0
    %10 = vsyncpa [#allocation5], 0
    // Predicated region
    $region2: #{conv1d_big_stride_add.1} parent=1 // pred_check
      _
    $region3: #{conv1d_big_stride_add.1} parent=1 // pred_check_branch
      %12 = sbr.rel (0) target = $region5
    $region4: #{conv1d_big_stride_add.1} parent=1 // pred_region
      _
    $region5: #{conv1d_big_stride_add.1} parent=1 // pred_fallthru
      _
    // Predicated region
    $region6: #{conv1d_big_stride_add.1} parent=1 // pred_check
      _
    $region7: #{conv1d_big_stride_add.1} parent=1 // pred_check_branch
      %14 = sbr.rel (0) target = $region9
    $region8: #{conv1d_big_stride_add.1} parent=1 // pred_region
      %s16 = ssub.s32 128, 128
      %17 = vsyncadd [#allocation4], %s16
      %s18 = sshll.u32 [#allocation3], 4
      %s19 = int_to_ptr.vmem [resolvable:$true] %s18
      %24 = dma.hbm_to_vmem [thread:$0]  %s1, 128, %s19, [#allocation4], 64, 64, 4
    $region9: #{conv1d_big_stride_add.1} parent=1 // pred_fallthru
      _
    // Predicated region
    $region10: #{conv1d_big_stride_add.1} parent=1 // pred_check
      _
    $region11: #{conv1d_big_stride_add.1} parent=1 // pred_check_branch
      %26 = sbr.rel (0) target = $region13
    $region12: #{conv1d_big_stride_add.1} parent=1 // pred_region
      _
    $region13: #{conv1d_big_stride_add.1} parent=1 // pred_fallthru
      _
    // Predicated region
    $region14: #{conv1d_big_stride_add.1} parent=1 // pred_check
      _
    $region15: #{conv1d_big_stride_add.1} parent=1 // pred_check_branch
      %28 = sbr.rel (0) target = $region17
    $region16: #{conv1d_big_stride_add.1} parent=1 // pred_region
      %29 = dma.done [#allocation4], 128
    $region17: #{conv1d_big_stride_add.1} parent=1 // pred_fallthru
      _
    %s31 = sld [smem:[#allocation2]]
    %v32 = vld [vmem:[#allocation3] sm:$0x1]
    %v33 = vld [vmem:[#allocation3 + $0x4] sm:$0x1]
    %v34 = vpack.c.bf16 %v32, %v32
    %v35 = vpack.c.bf16 %v33, %v33
    %v36 = vld [vmem:[%s2] sm:$0x1]
    %v37 = vld [vmem:[%s2 + $0x4] sm:$0x1]
    %v38 = vld [vmem:[%s2 + $0x8] sm:$0x1]
    %v39 = vpack.c.bf16 %v36, %v36
    %v40 = vpack.c.bf16 %v37, %v37
    %v41 = vpack.c.bf16 %v38, %v38
    %v42 = vld [vmem:[#allocation3 + $0x1] sm:$0x1]
    %v43 = vld [vmem:[#allocation3 + $0x5] sm:$0x1]
    %v44 = vpack.c.bf16 %v42, %v42
    %v45 = vpack.c.bf16 %v43, %v43
    %v46 = vld [vmem:[%s2 + $0x1] sm:$0x1]
    %v47 = vld [vmem:[%s2 + $0x5] sm:$0x1]
    %v48 = vld [vmem:[%s2 + $0x9] sm:$0x1]
    %v49 = vpack.c.bf16 %v46, %v46
    %v50 = vpack.c.bf16 %v47, %v47
    %v51 = vpack.c.bf16 %v48, %v48
    %v54 = vunpack.c.l.b16 %v44
    %v55 = vunpack.c.l.b16 %v45
    %v56 = vrot.slane %v55, 7
    %vm57 = vcmask 1041409
    %v58 = vsel %vm57, %v56, %v54
    %v59 = vpack.c.b16 %v58, %v58
    %v63 = vunpack.c.l.b16 %v49
    %v64 = vunpack.c.l.b16 %v50
    %v65 = vunpack.c.l.b16 %v51
    %v66 = vrot.slane %v64, 7
    %v67 = vsel %vm57, %v66, %v63
    %v68 = vrot.slane %v65, 6
    %vm69 = vcmask 1042434
    %v70 = vsel %vm69, %v68, %v67
    %v71 = vpack.c.b16 %v70, %v70
    %vm72 = vcmask 39936
    %v74 = vsel %vm72, %v59, 0
    %v77 = vsel %vm72, %v71, 0
    %79 = vmatprep.subr.bf16.mxu0 0
    %80 = vmatpush1.bf16.xpose.msra.mxu0 %v77
    %81 = vmatprep.subr.bf16.mxu0 0
    %82 = vmatpush1.bf16.xpose.msra.mxu0 0
    %83 = vmatprep.subr.bf16.mxu0 0
    %84 = vmatpush1.bf16.xpose.msra.mxu0 0
    %85 = vmatprep.subr.bf16.mxu0 0
    %86 = vmatpush1.bf16.xpose.msra.mxu0 0
    %87 = vmatprep.subr.bf16.mxu0 0
    %88 = vmatpush1.bf16.xpose.msra.mxu0 0
    %89 = vmatprep.subr.bf16.mxu0 0
    %90 = vmatpush1.bf16.xpose.msra.mxu0 0
    %91 = vmatprep.subr.bf16.mxu0 0
    %92 = vmatpush1.bf16.xpose.msra.mxu0 0
    %93 = vmatprep.subr.bf16.mxu0 0
    %94 = vmatpush1.bf16.xpose.msra.mxu0 0
    %95 = vmatprep.subr.bf16.mxu0 0
    %96 = vmatpush1.bf16.xpose.msra.mxu0 0
    %97 = vmatprep.subr.bf16.mxu0 0
    %98 = vmatpush1.bf16.xpose.msra.mxu0 0
    %99 = vmatprep.subr.bf16.mxu0 0
    %100 = vmatpush1.bf16.xpose.msra.mxu0 0
    %101 = vmatprep.subr.bf16.mxu0 0
    %102 = vmatpush1.bf16.xpose.msra.mxu0 0
    %103 = vmatprep.subr.bf16.mxu0 0
    %104 = vmatpush1.bf16.xpose.msra.mxu0 0
    %105 = vmatprep.subr.bf16.mxu0 0
    %106 = vmatpush1.bf16.xpose.msra.mxu0 0
    %107 = vmatprep.subr.bf16.mxu0 0
    %108 = vmatpush1.bf16.xpose.msra.mxu0 0
    %109 = vmatprep.subr.bf16.mxu0 0
    %110 = vmatpush1.bf16.xpose.msra.mxu0 0
    %111 = vmatprep.mubr.bf16.mxu0 0
    %112 = vmatmul.mubr.bf16.gmra.mrb[0].mxu0 %v74
    %v113 = vpop.f32.mrb[0].mxu0
    %v114 = vadd.f32 0.0, %v113
    %v115 = vpop.f32.mrb[0].mxu0
    %v116 = vpop.f32.mrb[0].mxu0
    %v117 = vpop.f32.mrb[0].mxu0
    %118 = vdwg.mxu0
    %v121 = vunpack.c.l.b16 %v34
    %v122 = vunpack.c.l.b16 %v35
    %v123 = vrot.slane %v122, 7
    %v124 = vsel %vm57, %v123, %v121
    %v125 = vpack.c.b16 %v124, %v124
    %v129 = vunpack.c.l.b16 %v39
    %v130 = vunpack.c.l.b16 %v40
    %v131 = vunpack.c.l.b16 %v41
    %v132 = vrot.slane %v130, 7
    %v133 = vsel %vm57, %v132, %v129
    %v134 = vrot.slane %v131, 6
    %v135 = vsel %vm69, %v134, %v133
    %v136 = vpack.c.b16 %v135, %v135
    %v138 = vsel %vm72, %v125, 0
    %v141 = vsel %vm72, %v136, 0
    %143 = vmatprep.subr.bf16.mxu0 0
    %144 = vmatpush1.bf16.xpose.msra.mxu0 %v141
    %145 = vmatprep.subr.bf16.mxu0 0
    %146 = vmatpush1.bf16.xpose.msra.mxu0 0
    %147 = vmatprep.subr.bf16.mxu0 0
    %148 = vmatpush1.bf16.xpose.msra.mxu0 0
    %149 = vmatprep.subr.bf16.mxu0 0
    %150 = vmatpush1.bf16.xpose.msra.mxu0 0
    %151 = vmatprep.subr.bf16.mxu0 0
    %152 = vmatpush1.bf16.xpose.msra.mxu0 0
    %153 = vmatprep.subr.bf16.mxu0 0
    %154 = vmatpush1.bf16.xpose.msra.mxu0 0
    %155 = vmatprep.subr.bf16.mxu0 0
    %156 = vmatpush1.bf16.xpose.msra.mxu0 0
    %157 = vmatprep.subr.bf16.mxu0 0
    %158 = vmatpush1.bf16.xpose.msra.mxu0 0
    %159 = vmatprep.subr.bf16.mxu0 0
    %160 = vmatpush1.bf16.xpose.msra.mxu0 0
    %161 = vmatprep.subr.bf16.mxu0 0
    %162 = vmatpush1.bf16.xpose.msra.mxu0 0
    %163 = vmatprep.subr.bf16.mxu0 0
    %164 = vmatpush1.bf16.xpose.msra.mxu0 0
    %165 = vmatprep.subr.bf16.mxu0 0
    %166 = vmatpush1.bf16.xpose.msra.mxu0 0
    %167 = vmatprep.subr.bf16.mxu0 0
    %168 = vmatpush1.bf16.xpose.msra.mxu0 0
    %169 = vmatprep.subr.bf16.mxu0 0
    %170 = vmatpush1.bf16.xpose.msra.mxu0 0
    %171 = vmatprep.subr.bf16.mxu0 0
    %172 = vmatpush1.bf16.xpose.msra.mxu0 0
    %173 = vmatprep.subr.bf16.mxu0 0
    %174 = vmatpush1.bf16.xpose.msra.mxu0 0
    %175 = vmatprep.mubr.bf16.mxu0 0
    %176 = vmatmul.mubr.bf16.gmra.mrb[0].mxu0 %v138
    %v177 = vpop.f32.mrb[0].mxu0
    %v178 = vadd.f32 %v114, %v177
    %v179 = vpop.f32.mrb[0].mxu0
    %v180 = vpop.f32.mrb[0].mxu0
    %v181 = vpop.f32.mrb[0].mxu0
    %182 = vdwg.mxu0
    %v183 = vld [vmem:[#allocation3 + $0x2] sm:$0x1]
    %v184 = vld [vmem:[#allocation3 + $0x6] sm:$0x1]
    %v185 = vpack.c.bf16 %v183, %v183
    %v186 = vpack.c.bf16 %v184, %v184
    %v187 = vld [vmem:[%s2 + $0x2] sm:$0x1]
    %v188 = vld [vmem:[%s2 + $0x6] sm:$0x1]
    %v189 = vld [vmem:[%s2 + $0xa] sm:$0x1]
    %v190 = vpack.c.bf16 %v187, %v187
    %v191 = vpack.c.bf16 %v188, %v188
    %v192 = vpack.c.bf16 %v189, %v189
    %v195 = vunpack.c.l.b16 %v185
    %v196 = vunpack.c.l.b16 %v186
    %v197 = vrot.slane %v196, 7
    %v198 = vsel %vm57, %v197, %v195
    %v199 = vpack.c.b16 %v198, %v198
    %v203 = vunpack.c.l.b16 %v190
    %v204 = vunpack.c.l.b16 %v191
    %v205 = vunpack.c.l.b16 %v192
    %v206 = vrot.slane %v204, 7
    %v207 = vsel %vm57, %v206, %v203
    %v208 = vrot.slane %v205, 6
    %v209 = vsel %vm69, %v208, %v207
    %v210 = vpack.c.b16 %v209, %v209
    %v212 = vsel %vm72, %v199, 0
    %v215 = vsel %vm72, %v210, 0
    %217 = vmatprep.subr.bf16.mxu0 0
    %218 = vmatpush1.bf16.xpose.msra.mxu0 %v215
    %219 = vmatprep.subr.bf16.mxu0 0
    %220 = vmatpush1.bf16.xpose.msra.mxu0 0
    %221 = vmatprep.subr.bf16.mxu0 0
    %222 = vmatpush1.bf16.xpose.msra.mxu0 0
    %223 = vmatprep.subr.bf16.mxu0 0
    %224 = vmatpush1.bf16.xpose.msra.mxu0 0
    %225 = vmatprep.subr.bf16.mxu0 0
    %226 = vmatpush1.bf16.xpose.msra.mxu0 0
    %227 = vmatprep.subr.bf16.mxu0 0
    %228 = vmatpush1.bf16.xpose.msra.mxu0 0
    %229 = vmatprep.subr.bf16.mxu0 0
    %230 = vmatpush1.bf16.xpose.msra.mxu0 0
    %231 = vmatprep.subr.bf16.mxu0 0
    %232 = vmatpush1.bf16.xpose.msra.mxu0 0
    %233 = vmatprep.subr.bf16.mxu0 0
    %234 = vmatpush1.bf16.xpose.msra.mxu0 0
    %235 = vmatprep.subr.bf16.mxu0 0
    %236 = vmatpush1.bf16.xpose.msra.mxu0 0
    %237 = vmatprep.subr.bf16.mxu0 0
    %238 = vmatpush1.bf16.xpose.msra.mxu0 0
    %239 = vmatprep.subr.bf16.mxu0 0
    %240 = vmatpush1.bf16.xpose.msra.mxu0 0
    %241 = vmatprep.subr.bf16.mxu0 0
    %242 = vmatpush1.bf16.xpose.msra.mxu0 0
    %243 = vmatprep.subr.bf16.mxu0 0
    %244 = vmatpush1.bf16.xpose.msra.mxu0 0
    %245 = vmatprep.subr.bf16.mxu0 0
    %246 = vmatpush1.bf16.xpose.msra.mxu0 0
    %247 = vmatprep.subr.bf16.mxu0 0
    %248 = vmatpush1.bf16.xpose.msra.mxu0 0
    %249 = vmatprep.mubr.bf16.mxu0 0
    %250 = vmatmul.mubr.bf16.gmra.mrb[0].mxu0 %v212
    %v251 = vpop.f32.mrb[0].mxu0
    %v252 = vadd.f32 0.0, %v251
    %v253 = vpop.f32.mrb[0].mxu0
    %v254 = vpop.f32.mrb[0].mxu0
    %v255 = vpop.f32.mrb[0].mxu0
    %256 = vdwg.mxu0
    %v257 = vadd.f32 %v178, %v252
    %v258 = vld [vmem:[#allocation3 + $0x3] sm:$0x1]
    %v259 = vld [vmem:[#allocation3 + $0x7] sm:$0x1]
    %v260 = vpack.c.bf16 %v258, %v258
    %v261 = vpack.c.bf16 %v259, %v259
    %v262 = vld [vmem:[%s2 + $0x3] sm:$0x1]
    %v263 = vld [vmem:[%s2 + $0x7] sm:$0x1]
    %v264 = vld [vmem:[%s2 + $0xb] sm:$0x1]
    %v265 = vpack.c.bf16 %v262, %v262
    %v266 = vpack.c.bf16 %v263, %v263
    %v267 = vpack.c.bf16 %v264, %v264
    %v270 = vunpack.c.l.b16 %v260
    %v271 = vunpack.c.l.b16 %v261
    %v272 = vrot.slane %v271, 7
    %v273 = vsel %vm57, %v272, %v270
    %v274 = vpack.c.b16 %v273, %v273
    %v278 = vunpack.c.l.b16 %v265
    %v279 = vunpack.c.l.b16 %v266
    %v280 = vunpack.c.l.b16 %v267
    %v281 = vrot.slane %v279, 7
    %v282 = vsel %vm57, %v281, %v278
    %v283 = vrot.slane %v280, 6
    %v284 = vsel %vm69, %v283, %v282
    %v285 = vpack.c.b16 %v284, %v284
    %v287 = vsel %vm72, %v274, 0
    %v290 = vsel %vm72, %v285, 0
    %292 = vmatprep.subr.bf16.mxu0 0
    %293 = vmatpush1.bf16.xpose.msra.mxu0 %v290
    %294 = vmatprep.subr.bf16.mxu0 0
    %295 = vmatpush1.bf16.xpose.msra.mxu0 0
    %296 = vmatprep.subr.bf16.mxu0 0
    %297 = vmatpush1.bf16.xpose.msra.mxu0 0
    %298 = vmatprep.subr.bf16.mxu0 0
    %299 = vmatpush1.bf16.xpose.msra.mxu0 0
    %300 = vmatprep.subr.bf16.mxu0 0
    %301 = vmatpush1.bf16.xpose.msra.mxu0 0
    %302 = vmatprep.subr.bf16.mxu0 0
    %303 = vmatpush1.bf16.xpose.msra.mxu0 0
    %304 = vmatprep.subr.bf16.mxu0 0
    %305 = vmatpush1.bf16.xpose.msra.mxu0 0
    %306 = vmatprep.subr.bf16.mxu0 0
    %307 = vmatpush1.bf16.xpose.msra.mxu0 0
    %308 = vmatprep.subr.bf16.mxu0 0
    %309 = vmatpush1.bf16.xpose.msra.mxu0 0
    %310 = vmatprep.subr.bf16.mxu0 0
    %311 = vmatpush1.bf16.xpose.msra.mxu0 0
    %312 = vmatprep.subr.bf16.mxu0 0
    %313 = vmatpush1.bf16.xpose.msra.mxu0 0
    %314 = vmatprep.subr.bf16.mxu0 0
    %315 = vmatpush1.bf16.xpose.msra.mxu0 0
    %316 = vmatprep.subr.bf16.mxu0 0
    %317 = vmatpush1.bf16.xpose.msra.mxu0 0
    %318 = vmatprep.subr.bf16.mxu0 0
    %319 = vmatpush1.bf16.xpose.msra.mxu0 0
    %320 = vmatprep.subr.bf16.mxu0 0
    %321 = vmatpush1.bf16.xpose.msra.mxu0 0
    %322 = vmatprep.subr.bf16.mxu0 0
    %323 = vmatpush1.bf16.xpose.msra.mxu0 0
    %324 = vmatprep.mubr.bf16.mxu0 0
    %325 = vmatmul.mubr.bf16.gmra.mrb[0].mxu0 %v287
    %v326 = vpop.f32.mrb[0].mxu0
    %v327 = vadd.f32 0.0, %v326
    %v328 = vpop.f32.mrb[0].mxu0
    %v329 = vpop.f32.mrb[0].mxu0
    %v330 = vpop.f32.mrb[0].mxu0
    %331 = vdwg.mxu0
    %v332 = vadd.f32 %v257, %v327
    %v333 = vstv %s31
    %v334 = vadd.f32 %v332, %v333
    %vm335 = vcmask 17408
    %336 = vst.msk [vmem:[#allocation6] sm:$0x3] %vm335, %v334
    // Predicated region
    $region18: #{conv1d_big_stride_add.1} parent=1 // pred_check
      _
    $region19: #{conv1d_big_stride_add.1} parent=1 // pred_check_branch
      %338 = sbr.rel (0) target = $region21
    $region20: #{conv1d_big_stride_add.1} parent=1 // pred_region
      %s340 = ssub.s32 32, 32
      %341 = vsyncadd [#allocation5], %s340
      %s343 = sshll.u32 [#allocation6], 4
      %s344 = int_to_ptr.vmem [resolvable:$true] %s343
      %346 = dma.vmem_to_hbm [thread:$0]  %s344, 32, %s3, [#allocation5]
    $region21: #{conv1d_big_stride_add.1} parent=1 // pred_fallthru
      _
    // Predicated region
    $region22: #{conv1d_big_stride_add.1} parent=1 // pred_check
      _
    $region23: #{conv1d_big_stride_add.1} parent=1 // pred_check_branch
      %348 = sbr.rel (0) target = $region25
    $region24: #{conv1d_big_stride_add.1} parent=1 // pred_region
      %349 = dma.done [#allocation5], 32
    $region25: #{conv1d_big_stride_add.1} parent=1 // pred_fallthru
      _
    %350 = vsyncpa [#allocation4], 1
    %351 = vsyncpa [#allocation5], 1

</llo_original>
